<compile_context>
chip_gen: v5e
topology: v5e:2x2
jax: 0.10.0
libtpu: 0.0.40
codegen_flags: <defaults>
</compile_context>

<pallas_src>
import functools

import jax
import jax.numpy as jnp
from jax.experimental import pallas as pl
from jax.experimental.pallas import tpu as pltpu


def _se_gate_kernel(x_ref, w1_ref, b1_ref, w2_ref, b2_ref, o_ref, acc_ref,
                    *, inv_hw, hw, thw, need_mask):
    k = pl.program_id(1)  # HW-chunk (reduction) axis — last grid axis

    @pl.when(k == 0)
    def _init():
        acc_ref[...] = jnp.zeros_like(acc_ref)

    # Partial spatial sum of this chunk, accumulated in f32 regardless of
    # the streaming dtype of x.
    x = x_ref[...].astype(jnp.float32)                       # (TB, C, THW)
    if need_mask:
        # Last chunk may run past H*W: zero the out-of-range lanes.
        col = jax.lax.broadcasted_iota(jnp.int32, (1, 1, thw), 2) + k * thw
        x = jnp.where(col < hw, x, 0.0)
    acc_ref[...] += jnp.sum(x, axis=-1)                      # (TB, C)

    @pl.when(k == pl.num_programs(1) - 1)
    def _finalize():
        # Mean = accumulated sum * compile-time 1/(H*W); then the tiny SE MLP
        # runs exactly once per batch tile.
        y = acc_ref[...] * inv_hw                                            # (TB, C)
        h = jnp.dot(y, w1_ref[...], preferred_element_type=jnp.float32)
        h = jnp.maximum(h + b1_ref[...], 0.0)                                # (TB, Cr)
        z = jnp.dot(h, w2_ref[...], preferred_element_type=jnp.float32)
        z = z + b2_ref[...]                                                  # (TB, C)
        o_ref[...] = jax.nn.sigmoid(z).astype(o_ref.dtype)


def channel_attention_gate(x_nchw, w1, b1, w2, b2, *, thw=None, tb=None):
    """x_nchw: (B, C, H, W).  w1: (C//r, C), b1: (C//r,), w2: (C, C//r), b2: (C,)
    (PyTorch nn.Linear convention: out = x @ W.T + b).  Returns (B, C, 1, 1)."""
    B, C, H, W = x_nchw.shape
    Cr = w1.shape[0]
    HW = H * W
    x3 = x_nchw.reshape(B, C, HW)            # native dtype — no f32 up-cast pass
    itemsize = jnp.dtype(x3.dtype).itemsize

    # ---- batch tile (parallel axis; shards across TCs on v7x) ----
    if tb is None:
        tb = 8 if (B > 8 and B % 8 == 0) else B
    if B % tb != 0:
        tb = B
    nb = B // tb

    # ---- HW tile (reduction axis): multiple of 128, ~4 MiB per block so a
    # double-buffered pipeline fits comfortably under every generation's
    # scoped VMEM (incl. v7x's 64 MiB physical / 32 MiB scoped). ----
    if thw is None:
        if HW <= 128:
            thw = HW
        else:
            target_bytes = 4 * 1024 * 1024
            thw = max(128, (target_bytes // max(1, tb * C * itemsize)) // 128 * 128)
            cap = (HW // 128) * 128 if HW >= 128 else HW
            thw = min(thw, cap)
    nk = pl.cdiv(HW, thw)
    need_mask = (HW % thw) != 0

    # Pre-transpose Linear weights so the kernel does plain row-major matmuls.
    w1_t = jnp.asarray(w1, jnp.float32).T            # (C, Cr)
    w2_t = jnp.asarray(w2, jnp.float32).T            # (Cr, C)
    b1_2d = jnp.asarray(b1, jnp.float32).reshape(1, Cr)
    b2_2d = jnp.asarray(b2, jnp.float32).reshape(1, C)

    kernel = functools.partial(
        _se_gate_kernel,
        inv_hw=float(1.0 / HW), hw=HW, thw=thw, need_mask=need_mask)

    # VMEM budget: double-buffered x blocks + resident weights/acc/out + headroom.
    x_block_bytes = tb * C * thw * itemsize
    fixed_bytes = 4 * (C * Cr * 2 + C + Cr + 2 * tb * C)
    vmem_limit = min(48 << 20, max(32 << 20, int(1.5 * (2 * x_block_bytes + fixed_bytes))))

    cost = pl.CostEstimate(
        flops=2 * B * C * HW + 4 * B * C * Cr,
        transcendentals=B * C,
        bytes_accessed=B * C * HW * itemsize + 8 * C * Cr + 4 * (C + Cr)
        + B * C * itemsize,
    )

    out = pl.pallas_call(
        kernel,
        out_shape=jax.ShapeDtypeStruct((B, C), x_nchw.dtype),
        grid=(nb, nk),
        in_specs=[
            pl.BlockSpec((tb, C, thw), lambda i, k: (i, 0, k)),   # streamed x chunks
            pl.BlockSpec((C, Cr), lambda i, k: (0, 0)),           # resident weights
            pl.BlockSpec((1, Cr), lambda i, k: (0, 0)),
            pl.BlockSpec((Cr, C), lambda i, k: (0, 0)),
            pl.BlockSpec((1, C), lambda i, k: (0, 0)),
        ],
        out_specs=pl.BlockSpec((tb, C), lambda i, k: (i, 0)),     # resident across k
        scratch_shapes=[pltpu.VMEM((tb, C), jnp.float32)],        # f32 pooled-sum acc
        compiler_params=pltpu.CompilerParams(
            dimension_semantics=("parallel", "arbitrary"),
            vmem_limit_bytes=vmem_limit),
        cost_estimate=cost,
    )(x3, w1_t, b1_2d, w2_t, b2_2d)

    return out.reshape(B, C, 1, 1).astype(x_nchw.dtype)


if __name__ == "__main__":
    B, C, H, W = 2, 32, 16, 16
    reduction = 16
    Cr = C // reduction

    key = jax.random.PRNGKey(0)
    kx, k1, k2, k3, k4 = jax.random.split(key, 5)

    x = jax.random.normal(kx, (B, C, H, W), dtype=jnp.float32)
    # Deterministic synthetic parameters (nn.Linear shapes).
    w1 = jax.random.normal(k1, (Cr, C), dtype=jnp.float32) * 0.1
    b1 = jax.random.normal(k2, (Cr,), dtype=jnp.float32) * 0.1
    w2 = jax.random.normal(k3, (C, Cr), dtype=jnp.float32) * 0.1
    b2 = jax.random.normal(k4, (C,), dtype=jnp.float32) * 0.1

    # Pure-JAX reference (same math as the PyTorch module).
    y_ref = jnp.mean(x, axis=(2, 3))                      # (B, C)
    y_ref = jnp.maximum(y_ref @ w1.T + b1, 0.0)
    y_ref = jax.nn.sigmoid(y_ref @ w2.T + b2).reshape(B, C, 1, 1)

    # Force thw=128 so the multi-chunk accumulate/finalize path is exercised.
    y = jax.block_until_ready(channel_attention_gate(x, w1, b1, w2, b2, thw=128))
    assert y.shape == (B, C, 1, 1)
    assert jnp.allclose(y, y_ref, atol=1e-5, rtol=1e-5)

    # Also exercise the auto tile-size path (single full-HW chunk here).
    y2 = jax.block_until_ready(channel_attention_gate(x, w1, b1, w2, b2))
    assert jnp.allclose(y2, y_ref, atol=1e-5, rtol=1e-5)

    print("KERNEL_OK")
</pallas_src>

<mosaic_0001>
module attributes {stable_mosaic.version = 11 : i64} {
  func.func @_se_gate_kernel(%arg0: i32, %arg1: i32, %arg2: memref<2x32x128xf32, #tpu.memory_space<vmem>>, %arg3: memref<32x2xf32, #tpu.memory_space<vmem>>, %arg4: memref<1x2xf32, #tpu.memory_space<vmem>>, %arg5: memref<2x32xf32, #tpu.memory_space<vmem>>, %arg6: memref<1x32xf32, #tpu.memory_space<vmem>>, %arg7: memref<2x32xf32, #tpu.memory_space<vmem>>, %arg8: memref<2x32xf32, #tpu.memory_space<vmem>>) attributes {dimension_semantics = [#tpu.dimension_semantics<parallel>, #tpu.dimension_semantics<arbitrary>], iteration_bounds = array<i64: 1, 2>, scalar_prefetch = 0 : i64, scratch_operands = 1 : i64, tpu.core_type = #tpu.core_type<tc>, window_params = [{transform_indices = @transform_0, window_bounds = array<i64: 2, 32, 128>}, {pipeline_mode = #tpu.pipeline_mode<synchronous>, transform_indices = @transform_1, window_bounds = array<i64: 32, 2>}, {pipeline_mode = #tpu.pipeline_mode<synchronous>, transform_indices = @transform_2, window_bounds = array<i64: 1, 2>}, {pipeline_mode = #tpu.pipeline_mode<synchronous>, transform_indices = @transform_3, window_bounds = array<i64: 2, 32>}, {pipeline_mode = #tpu.pipeline_mode<synchronous>, transform_indices = @transform_4, window_bounds = array<i64: 1, 32>}, {transform_indices = @transform_5, window_bounds = array<i64: 2, 32>}]} {
    %c0_i32 = arith.constant 0 : i32
    %0 = arith.cmpi eq, %arg1, %c0_i32 : i32
    %1 = arith.extui %0 : i1 to i32
    %c0_i32_0 = arith.constant 0 : i32
    %2 = arith.cmpi ne, %1, %c0_i32_0 : i32
    scf.if %2 {
      %cst_8 = arith.constant 0.000000e+00 : f32
      %11 = vector.broadcast %cst_8 : f32 to vector<2x32xf32>
      %c0_9 = arith.constant 0 : index
      %c0_10 = arith.constant 0 : index
      %12 = vector.load %arg8[%c0_9, %c0_10] : memref<2x32xf32, #tpu.memory_space<vmem>>, vector<2x32xf32>
      tpu.vector_store %arg8[%c0_9, %c0_10], %11 {strides = array<i32>} : memref<2x32xf32, #tpu.memory_space<vmem>>, vector<2x32xf32>,
    } else {
    }
    %c0 = arith.constant 0 : index
    %c0_1 = arith.constant 0 : index
    %c0_2 = arith.constant 0 : index
    %3 = vector.load %arg2[%c0, %c0_1, %c0_2] : memref<2x32x128xf32, #tpu.memory_space<vmem>>, vector<2x32x128xf32>
    %c0_3 = arith.constant 0 : index
    %c0_4 = arith.constant 0 : index
    %4 = vector.load %arg8[%c0_3, %c0_4] : memref<2x32xf32, #tpu.memory_space<vmem>>, vector<2x32xf32>
    %cst = arith.constant dense<0.000000e+00> : vector<2x32xf32>
    %5 = vector.multi_reduction <add>, %3, %cst [2] : vector<2x32x128xf32> to vector<2x32xf32>
    %6 = arith.addf %4, %5 : vector<2x32xf32>
    %c0_5 = arith.constant 0 : index
    %c0_6 = arith.constant 0 : index
    %7 = vector.load %arg8[%c0_5, %c0_6] : memref<2x32xf32, #tpu.memory_space<vmem>>, vector<2x32xf32>
    tpu.vector_store %arg8[%c0_5, %c0_6], %6 {strides = array<i32>} : memref<2x32xf32, #tpu.memory_space<vmem>>, vector<2x32xf32>,
    %c1_i32 = arith.constant 1 : i32
    %8 = arith.cmpi eq, %arg1, %c1_i32 : i32
    %9 = arith.extui %8 : i1 to i32
    %c0_i32_7 = arith.constant 0 : i32
    %10 = arith.cmpi ne, %9, %c0_i32_7 : i32
    scf.if %10 {
      %c0_8 = arith.constant 0 : index
      %c0_9 = arith.constant 0 : index
      %11 = vector.load %arg8[%c0_8, %c0_9] : memref<2x32xf32, #tpu.memory_space<vmem>>, vector<2x32xf32>
      %cst_10 = arith.constant 3.906250e-03 : f32
      %12 = vector.broadcast %cst_10 : f32 to vector<2x32xf32>
      %13 = arith.mulf %11, %12 : vector<2x32xf32>
      %c0_11 = arith.constant 0 : index
      %c0_12 = arith.constant 0 : index
      %14 = vector.load %arg3[%c0_11, %c0_12] : memref<32x2xf32, #tpu.memory_space<vmem>>, vector<32x2xf32>
      %cst_13 = arith.constant dense<0.000000e+00> : vector<2x2xf32>
      %15 = tpu.matmul %13, %14, %cst_13 {dimension_numbers = #tpu.dot_dimension_numbers<[1], [0], [0], [1], [0, 0, 1, 1], [], []>} : vector<2x32xf32>, vector<32x2xf32>, vector<2x2xf32> -> vector<2x2xf32>
      %c0_14 = arith.constant 0 : index
      %c0_15 = arith.constant 0 : index
      %16 = vector.load %arg4[%c0_14, %c0_15] : memref<1x2xf32, #tpu.memory_space<vmem>>, vector<1x2xf32>
      %17 = vector.broadcast %16 : vector<1x2xf32> to vector<2x2xf32>
      %18 = arith.addf %15, %17 : vector<2x2xf32>
      %cst_16 = arith.constant 0.000000e+00 : f32
      %19 = vector.broadcast %cst_16 : f32 to vector<2x2xf32>
      %20 = arith.maximumf %18, %19 : vector<2x2xf32>
      %c0_17 = arith.constant 0 : index
      %c0_18 = arith.constant 0 : index
      %21 = vector.load %arg5[%c0_17, %c0_18] : memref<2x32xf32, #tpu.memory_space<vmem>>, vector<2x32xf32>
      %cst_19 = arith.constant dense<0.000000e+00> : vector<2x32xf32>
      %22 = tpu.matmul %20, %21, %cst_19 {dimension_numbers = #tpu.dot_dimension_numbers<[1], [0], [0], [1], [0, 0, 1, 1], [], []>} : vector<2x2xf32>, vector<2x32xf32>, vector<2x32xf32> -> vector<2x32xf32>
      %c0_20 = arith.constant 0 : index
      %c0_21 = arith.constant 0 : index
      %23 = vector.load %arg6[%c0_20, %c0_21] : memref<1x32xf32, #tpu.memory_space<vmem>>, vector<1x32xf32>
      %24 = vector.broadcast %23 : vector<1x32xf32> to vector<2x32xf32>
      %25 = arith.addf %22, %24 : vector<2x32xf32>
      %26 = arith.negf %25 : vector<2x32xf32>
      %27 = math.exp %26 : vector<2x32xf32>
      %cst_22 = arith.constant 1.000000e+00 : f32
      %28 = vector.broadcast %cst_22 : f32 to vector<2x32xf32>
      %29 = arith.addf %28, %27 : vector<2x32xf32>
      %30 = arith.divf %28, %29 : vector<2x32xf32>
      %c0_23 = arith.constant 0 : index
      %c0_24 = arith.constant 0 : index
      %31 = vector.load %arg7[%c0_23, %c0_24] : memref<2x32xf32, #tpu.memory_space<vmem>>, vector<2x32xf32>
      tpu.vector_store %arg7[%c0_23, %c0_24], %30 {strides = array<i32>} : memref<2x32xf32, #tpu.memory_space<vmem>>, vector<2x32xf32>,
    } else {
    }
    return
  }
  func.func @transform_0(%arg0: i32, %arg1: i32) -> (i32, i32, i32) {
    %c0_i32 = arith.constant 0 : i32
    %c0_i32_0 = arith.constant 0 : i32
    return %arg0, %c0_i32, %arg1 : i32, i32, i32
  }
  func.func @transform_1(%arg0: i32, %arg1: i32) -> (i32, i32) {
    %c0_i32 = arith.constant 0 : i32
    %c0_i32_0 = arith.constant 0 : i32
    %c0_i32_1 = arith.constant 0 : i32
    return %c0_i32, %c0_i32_0 : i32, i32
  }
  func.func @transform_2(%arg0: i32, %arg1: i32) -> (i32, i32) {
    %c0_i32 = arith.constant 0 : i32
    %c0_i32_0 = arith.constant 0 : i32
    %c0_i32_1 = arith.constant 0 : i32
    return %c0_i32, %c0_i32_0 : i32, i32
  }
  func.func @transform_3(%arg0: i32, %arg1: i32) -> (i32, i32) {
    %c0_i32 = arith.constant 0 : i32
    %c0_i32_0 = arith.constant 0 : i32
    %c0_i32_1 = arith.constant 0 : i32
    return %c0_i32, %c0_i32_0 : i32, i32
  }
  func.func @transform_4(%arg0: i32, %arg1: i32) -> (i32, i32) {
    %c0_i32 = arith.constant 0 : i32
    %c0_i32_0 = arith.constant 0 : i32
    %c0_i32_1 = arith.constant 0 : i32
    return %c0_i32, %c0_i32_0 : i32, i32
  }
  func.func @transform_5(%arg0: i32, %arg1: i32) -> (i32, i32) {
    %c0_i32 = arith.constant 0 : i32
    %c0_i32_0 = arith.constant 0 : i32
    return %arg0, %c0_i32 : i32, i32
  }
}

</mosaic_0001>

<llo_original>
// kernel: tpu_custom_call.1
$region0: #{tpu_custom_call.1}
  #allocation0 [shape = 'u32[]', space=smem, size = 0x4, offset = 0x4, fixed_abs, tag = 'smem constant byte address 0x4 - core index']
  #allocation1 [shape = 'u32[72,128]{1,0:T(1,128)}', space=vmem, size = 0x9000, scoped, tag = 'internal scratch']
  #allocation2 [shape = 'f32[2,32]{1,0:T(2,128)}', space=vmem, size = 0x400, scoped, tag = 'scratch operand']
  %s0 = inlined_call_operand.hbm [shape: f32[2,32,256], index: 0, kind: input, shape index: {}]
  %s1 = inlined_call_operand.vmem [shape: f32[32,2], index: 1, kind: input, shape index: {}]
  %s2 = inlined_call_operand.vmem [shape: f32[1,2], index: 2, kind: input, shape index: {}]
  %s3 = inlined_call_operand.vmem [shape: f32[2,32], index: 3, kind: input, shape index: {}]
  %s4 = inlined_call_operand.vmem [shape: f32[1,32], index: 4, kind: input, shape index: {}]
  %s5 = inlined_call_operand.hbm [shape: f32[2,32], index: 5, kind: output, shape index: {}]
  %s6 = sld [smem:[#allocation0]]
  $region65: #{tpu_custom_call.1} parent=0
    _
  %s8 = ssub.s32 1, %s6
  %s9 = scalar_select 0, %s8, %s6
  $region1: #{tpu_custom_call.1} parent=0
    #allocation3 [shape = 'u8[65536]{0}', space=vmem, size = 0x10000, scoped, tag = 'input window, operand 0']
    #allocation4 [shape = 's32[2]{0}', space=sflag, size = 0x8, scoped, tag = 'scoped memory for tpu_custom_call.1']
    #allocation5 [shape = 's32[2]{0}', space=sflag, size = 0x8, scoped, tag = 'scoped memory for tpu_custom_call.1']
    #allocation6 [shape = 'u8[1024]{0}', space=vmem, size = 0x400, scoped, tag = 'output window, operand 0, single buffered']
    %10 = vsyncpa [#allocation4], 0
    %s11 = scalar_lea.sflag [#allocation4], 1
    %12 = vsyncpa %s11, 0
    %13 = vsyncpa [#allocation5], 0
    loop: start=0, step=1, limit=4
    $region2: #{tpu_custom_call.1} parent=1 // loop_pre_header
      _
    $region3: #{tpu_custom_call.1} parent=1 // loop_header
      %s15 = sphi 0, %s19
      %p16 = scmp.ge.s32.totalorder %s15, 4
      %s22 = sphi 0, %s34
      %s23 = sphi 0, %s30
      %s24 = sphi 0, %s22
      %s25 = sphi 0, %s23
      %s26 = sphi 0, %s24
      %s27 = sphi 0, %s25
      %s39 = sphi 0, %s41
      %s42 = sphi 0, %s39
      %s43 = sphi 0, %s42
      %s59 = sphi 0, %s43
      %s63 = sphi 0, %s63
      %s65 = sphi 0, %s63
      %s66 = sphi 0, %s65
      %s80 = sphi 0, %s66
      %s84 = sphi 0, %s84
      %s86 = sphi 0, %s84
      %s87 = sphi 0, %s86
      %s101 = sphi 0, %s87
      %s105 = sphi 0, %s105
      %s107 = sphi 0, %s105
      %s108 = sphi 0, %s107
      %s122 = sphi 0, %s108
      %s126 = sphi 0, %s126
      %s128 = sphi 0, %s126
      %s129 = sphi 0, %s128
      %s143 = sphi 0, %s129
      %s149 = sphi 0, %s151
      %s152 = sphi 0, %s149
      %s153 = sphi 0, %s152
      %s169 = sphi 0, %s153
    $region4: #{tpu_custom_call.1} parent=1 // loop_header_branch
      %18 = sbr.rel (%p16) target = $region8
    $region5: #{tpu_custom_call.1} parent=1 // loop_body
      %s20 = ssub.s32 %s15, 1
      %s21 = ssub.s32 %s15, 2
      %s28 = sadd.s32 1, %s23
      %p29 = scmp.ge.s32.totalorder %s28, 2
      %s30 = scalar_select %p29, 0, %s28
      %s31 = sadd.s32 1, %s22
      %s32 = scalar_select %p29, %s31, %s22
      %p33 = scmp.ge.s32.totalorder %s32, 1
      %s34 = scalar_select %p33, 0, %s32
      %s35 = ssub.s32 %s22, %s34
      %s36 = ssub.s32 %s23, %s30
      %s37 = sor.u32 %s35, %s36
      %p38 = scmp.eq.s32.totalorder %s37, 0
      %s40 = sadd.s32 %s39, 1
      %s41 = scalar_select %p38, %s39, %s40
      %p44 = pneg %p38
      %p45 = scmp.eq.s32.totalorder %s15, 1
      %p46 = por %p44, %p45
      %p47 = scmp.ne.s32.totalorder %s39, %s42
      %p48 = scmp.eq.s32.totalorder %s15, 0
      %p49 = por %p47, %p48
      %p50 = scmp.ne.s32.totalorder %s39, %s42
      %p51 = scmp.eq.s32.totalorder %s20, 1
      %p52 = por %p50, %p51
      %p53 = scmp.ne.s32.totalorder %s42, %s43
      %p54 = scmp.eq.s32.totalorder %s20, 0
      %p55 = por %p53, %p54
      %p56 = scmp.ne.s32.totalorder %s42, %s43
      %p57 = scmp.eq.s32.totalorder %s21, 1
      %p58 = por %p56, %p57
      %p60 = scmp.ne.s32.totalorder %s43, %s59
      %p61 = scmp.eq.s32.totalorder %s21, 0
      %p62 = por %p60, %p61
      %s64 = sadd.s32 %s63, 1
      %p67 = scmp.eq.s32.totalorder %s15, 1
      %p68 = scmp.ne.s32.totalorder %s63, %s65
      %p69 = scmp.eq.s32.totalorder %s15, 0
      %p70 = por %p68, %p69
      %p71 = scmp.ne.s32.totalorder %s63, %s65
      %p72 = scmp.eq.s32.totalorder %s20, 1
      %p73 = por %p71, %p72
      %p74 = scmp.ne.s32.totalorder %s65, %s66
      %p75 = scmp.eq.s32.totalorder %s20, 0
      %p76 = por %p74, %p75
      %p77 = scmp.ne.s32.totalorder %s65, %s66
      %p78 = scmp.eq.s32.totalorder %s21, 1
      %p79 = por %p77, %p78
      %p81 = scmp.ne.s32.totalorder %s66, %s80
      %p82 = scmp.eq.s32.totalorder %s21, 0
      %p83 = por %p81, %p82
      %s85 = sadd.s32 %s84, 1
      %p88 = scmp.eq.s32.totalorder %s15, 1
      %p89 = scmp.ne.s32.totalorder %s84, %s86
      %p90 = scmp.eq.s32.totalorder %s15, 0
      %p91 = por %p89, %p90
      %p92 = scmp.ne.s32.totalorder %s84, %s86
      %p93 = scmp.eq.s32.totalorder %s20, 1
      %p94 = por %p92, %p93
      %p95 = scmp.ne.s32.totalorder %s86, %s87
      %p96 = scmp.eq.s32.totalorder %s20, 0
      %p97 = por %p95, %p96
      %p98 = scmp.ne.s32.totalorder %s86, %s87
      %p99 = scmp.eq.s32.totalorder %s21, 1
      %p100 = por %p98, %p99
      %p102 = scmp.ne.s32.totalorder %s87, %s101
      %p103 = scmp.eq.s32.totalorder %s21, 0
      %p104 = por %p102, %p103
      %s106 = sadd.s32 %s105, 1
      %p109 = scmp.eq.s32.totalorder %s15, 1
      %p110 = scmp.ne.s32.totalorder %s105, %s107
      %p111 = scmp.eq.s32.totalorder %s15, 0
      %p112 = por %p110, %p111
      %p113 = scmp.ne.s32.totalorder %s105, %s107
      %p114 = scmp.eq.s32.totalorder %s20, 1
      %p115 = por %p113, %p114
      %p116 = scmp.ne.s32.totalorder %s107, %s108
      %p117 = scmp.eq.s32.totalorder %s20, 0
      %p118 = por %p116, %p117
      %p119 = scmp.ne.s32.totalorder %s107, %s108
      %p120 = scmp.eq.s32.totalorder %s21, 1
      %p121 = por %p119, %p120
      %p123 = scmp.ne.s32.totalorder %s108, %s122
      %p124 = scmp.eq.s32.totalorder %s21, 0
      %p125 = por %p123, %p124
      %s127 = sadd.s32 %s126, 1
      %p130 = scmp.eq.s32.totalorder %s15, 1
      %p131 = scmp.ne.s32.totalorder %s126, %s128
      %p132 = scmp.eq.s32.totalorder %s15, 0
      %p133 = por %p131, %p132
      %p134 = scmp.ne.s32.totalorder %s126, %s128
      %p135 = scmp.eq.s32.totalorder %s20, 1
      %p136 = por %p134, %p135
      %p137 = scmp.ne.s32.totalorder %s128, %s129
      %p138 = scmp.eq.s32.totalorder %s20, 0
      %p139 = por %p137, %p138
      %p140 = scmp.ne.s32.totalorder %s128, %s129
      %p141 = scmp.eq.s32.totalorder %s21, 1
      %p142 = por %p140, %p141
      %p144 = scmp.ne.s32.totalorder %s129, %s143
      %p145 = scmp.eq.s32.totalorder %s21, 0
      %p146 = por %p144, %p145
      %s147 = ssub.s32 %s22, %s34
      %p148 = scmp.eq.s32.totalorder %s147, 0
      %s150 = sadd.s32 %s149, 1
      %s151 = scalar_select %p148, %s149, %s150
      %p154 = pneg %p148
      %p155 = scmp.eq.s32.totalorder %s15, 1
      %p156 = por %p154, %p155
      %p157 = scmp.ne.s32.totalorder %s149, %s152
      %p158 = scmp.eq.s32.totalorder %s15, 0
      %p159 = por %p157, %p158
      %p160 = scmp.ne.s32.totalorder %s149, %s152
      %p161 = scmp.eq.s32.totalorder %s20, 1
      %p162 = por %p160, %p161
      %p163 = scmp.ne.s32.totalorder %s152, %s153
      %p164 = scmp.eq.s32.totalorder %s20, 0
      %p165 = por %p163, %p164
      %p166 = scmp.ne.s32.totalorder %s152, %s153
      %p167 = scmp.eq.s32.totalorder %s21, 1
      %p168 = por %p166, %p167
      %p170 = scmp.ne.s32.totalorder %s153, %s169
      %p171 = scmp.eq.s32.totalorder %s21, 0
      %p172 = por %p170, %p171
      %p173 = scmp.le.s32.totalorder 1, %s15
      %p174 = scmp.lt.s32.totalorder %s15, 3
      %p175 = pnand %p173, %p174
      %p176 = pneg %p175
      // Predicated region
      $region9: #{tpu_custom_call.1} parent=5 // pred_check
        _
      $region10: #{tpu_custom_call.1} parent=5 // pred_check_branch
        %178 = sbr.rel (%p175) target = $region12
      $region11: #{tpu_custom_call.1} parent=5 // pred_region
        %s179 = ssub.s32 %s15, 1
        // Predicated region
        $region13: #{tpu_custom_call.1} parent=11 // pred_check
          %p180 = pneg %p76
        $region14: #{tpu_custom_call.1} parent=11 // pred_check_branch
          %182 = sbr.rel (%p180) target = $region16
        $region15: #{tpu_custom_call.1} parent=11 // pred_region
          _
        $region16: #{tpu_custom_call.1} parent=11 // pred_fallthru
          _
        // Predicated region
        $region17: #{tpu_custom_call.1} parent=11 // pred_check
          %p183 = pneg %p97
        $region18: #{tpu_custom_call.1} parent=11 // pred_check_branch
          %185 = sbr.rel (%p183) target = $region20
        $region19: #{tpu_custom_call.1} parent=11 // pred_region
          _
        $region20: #{tpu_custom_call.1} parent=11 // pred_fallthru
          _
        // Predicated region
        $region21: #{tpu_custom_call.1} parent=11 // pred_check
          %p186 = pneg %p118
        $region22: #{tpu_custom_call.1} parent=11 // pred_check_branch
          %188 = sbr.rel (%p186) target = $region24
        $region23: #{tpu_custom_call.1} parent=11 // pred_region
          _
        $region24: #{tpu_custom_call.1} parent=11 // pred_fallthru
          _
        // Predicated region
        $region25: #{tpu_custom_call.1} parent=11 // pred_check
          %p189 = pneg %p139
        $region26: #{tpu_custom_call.1} parent=11 // pred_check_branch
          %191 = sbr.rel (%p189) target = $region28
        $region27: #{tpu_custom_call.1} parent=11 // pred_region
          _
        $region28: #{tpu_custom_call.1} parent=11 // pred_fallthru
          _
      $region12: #{tpu_custom_call.1} parent=5 // pred_fallthru
        _
      %p192 = scmp.lt.s32.totalorder %s15, 2
      // Predicated region
      $region29: #{tpu_custom_call.1} parent=5 // pred_check
        %p193 = pneg %p192
      $region30: #{tpu_custom_call.1} parent=5 // pred_check_branch
        %195 = sbr.rel (%p193) target = $region32
      $region31: #{tpu_custom_call.1} parent=5 // pred_region
        // Predicated region
        $region33: #{tpu_custom_call.1} parent=31 // pred_check
          %p196 = pneg %p49
        $region34: #{tpu_custom_call.1} parent=31 // pred_check_branch
          %198 = sbr.rel (%p196) target = $region36
        $region35: #{tpu_custom_call.1} parent=31 // pred_region
          %s199 = sand.u32 %s39, 1
          %s200 = scalar_lea.sflag [#allocation4], %s199
          %s201 = sand.u32 %s39, 1
          %s202 = smul.addr %s201, 64
          %s203 = scalar_lea.vmem [#allocation3], %s202
          %s204 = smul.u32 2, %s22
          %206 = vsyncadd %s200, 0
          %s207 = smul.addr %s204, 8
          %s208 = sadd.s32 %s23, %s207
          %s209 = smul.addr %s208, 8
          %s210 = scalar_lea.hbm %s0, %s209
          %s211 = sshll.u32 %s210, 4
          %s212 = int_to_ptr.hbm [resolvable:$true] %s211
          %s213 = sshll.u32 %s203, 4
          %s214 = int_to_ptr.vmem [resolvable:$true] %s213
          %219 = dma.hbm_to_vmem [thread:$0]  %s212, 1024, %s214, %s200, 256, 128, 8
        $region36: #{tpu_custom_call.1} parent=31 // pred_fallthru
          _
      $region32: #{tpu_custom_call.1} parent=5 // pred_fallthru
        _
      %p220 = scmp.le.s32.totalorder 1, %s15
      %p221 = scmp.lt.s32.totalorder %s15, 3
      %p222 = pnand %p220, %p221
      %p223 = pneg %p222
      // Predicated region
      $region37: #{tpu_custom_call.1} parent=5 // pred_check
        _
      $region38: #{tpu_custom_call.1} parent=5 // pred_check_branch
        %225 = sbr.rel (%p222) target = $region40
      $region39: #{tpu_custom_call.1} parent=5 // pred_region
        %s226 = ssub.s32 %s15, 1
        %s227 = sand.u32 %s42, 1
        %s228 = scalar_lea.sflag [#allocation4], %s227
        %s229 = sand.u32 %s42, 1
        %s230 = smul.addr %s229, 64
        %s231 = scalar_lea.vmem [#allocation3], %s230
        // Predicated region
        $region41: #{tpu_custom_call.1} parent=39 // pred_check
          %p232 = pneg %p55
        $region42: #{tpu_custom_call.1} parent=39 // pred_check_branch
          %234 = sbr.rel (%p232) target = $region44
        $region43: #{tpu_custom_call.1} parent=39 // pred_region
          %236 = dma.done %s228, 1024
        $region44: #{tpu_custom_call.1} parent=39 // pred_fallthru
          _
        %s237 = sand.u32 %s42, 1
        %s238 = scalar_lea.sflag [#allocation4], %s237
        %s239 = sand.u32 %s42, 1
        %s240 = smul.addr %s239, 64
        %s241 = scalar_lea.vmem [#allocation3], %s240
        %p242 = pneg %p55
        %p243 = pneg %p52
        %p244 = pneg %p76
        %p245 = pneg %p73
        %p246 = pneg %p97
        %p247 = pneg %p94
        %p248 = pneg %p118
        %p249 = pneg %p115
        %p250 = pneg %p139
        %p251 = pneg %p136
        %p252 = pneg %p165
        %p253 = pneg %p162
        %s254 = smul.u32 2, %s24
        %p255 = scmp.eq.s32.totalorder %s25, 0
        // Predicated region
        $region45: #{tpu_custom_call.1} parent=39 // pred_check
          %p256 = pneg %p255
        $region46: #{tpu_custom_call.1} parent=39 // pred_check_branch
          %258 = sbr.rel (%p256) target = $region48
        $region47: #{tpu_custom_call.1} parent=39 // pred_region
          %vm259 = vcmask 254976
          %260 = vst.msk [vmem:[#allocation2] sm:$0x3] %vm259, 0.0
        $region48: #{tpu_custom_call.1} parent=39 // pred_fallthru
          _
        %v261 = vld [vmem:[%s231] sm:$0xff]
        %v262 = vld [vmem:[%s231 + $0x8] sm:$0xff]
        %v263 = vld [vmem:[%s231 + $0x10] sm:$0xff]
        %v264 = vld [vmem:[%s231 + $0x18] sm:$0xff]
        %v265 = vld [vmem:[%s231 + $0x20] sm:$0xff]
        %v266 = vld [vmem:[%s231 + $0x28] sm:$0xff]
        %v267 = vld [vmem:[%s231 + $0x30] sm:$0xff]
        %v268 = vld [vmem:[%s231 + $0x38] sm:$0xff]
        %v269 = vld [vmem:[#allocation2] sm:$0x3]
        %270 = vadd.xlane.f32.xlu0 %v261
        %v271 = vpop.xlane.xlu0 %270
        %272 = vadd.xlane.f32.xlu0 %v262
        %v273 = vpop.xlane.xlu0 %272
        %274 = vadd.xlane.f32.xlu0 %v263
        %v275 = vpop.xlane.xlu0 %274
        %276 = vadd.xlane.f32.xlu0 %v264
        %v277 = vpop.xlane.xlu0 %276
        %278 = vadd.xlane.f32.xlu0 %v265
        %v279 = vpop.xlane.xlu0 %278
        %280 = vadd.xlane.f32.xlu0 %v266
        %v281 = vpop.xlane.xlu0 %280
        %282 = vadd.xlane.f32.xlu0 %v267
        %v283 = vpop.xlane.xlu0 %282
        %284 = vadd.xlane.f32.xlu0 %v268
        %v285 = vpop.xlane.xlu0 %284
        %v294 = vlaneseq
        %v295 = vand.u32 %v294, 127
        %v296 = vperm.slane %v271, %v295
        %v297 = vadd.s32 %v295, 4294967288
        %v298 = vperm.slane %v273, %v297
        %vm299 = vcmask 130112
        %v300 = vsel %vm299, %v298, %v296
        %v301 = vadd.s32 %v295, 4294967280
        %v302 = vperm.slane %v275, %v301
        %vm303 = vcmask 195712
        %v304 = vsel %vm303, %v302, %v300
        %v305 = vadd.s32 %v295, 4294967272
        %v306 = vperm.slane %v277, %v305
        %vm307 = vcmask 261312
        %v308 = vsel %vm307, %v306, %v304
        %v309 = vperm.slane %v279, %v295
        %v310 = vperm.slane %v281, %v297
        %v311 = vsel %vm299, %v310, %v309
        %v312 = vperm.slane %v283, %v301
        %v313 = vsel %vm303, %v312, %v311
        %v314 = vperm.slane %v285, %v305
        %v315 = vsel %vm307, %v314, %v313
        %vm316 = vcmask 1041409
        %v317 = vsel %vm316, %v315, %v308
        %v319 = vadd.f32 %v269, %v317
        %vm320 = vcmask 254976
        %321 = vst.msk [vmem:[#allocation2] sm:$0x3] %vm320, %v319
        %p322 = scmp.eq.s32.totalorder %s25, 1
        // Predicated region
        $region49: #{tpu_custom_call.1} parent=39 // pred_check
          %p323 = pneg %p322
        $region50: #{tpu_custom_call.1} parent=39 // pred_check_branch
          %325 = sbr.rel (%p323) target = $region52
        $region51: #{tpu_custom_call.1} parent=39 // pred_region
          %v326 = vld [vmem:[#allocation2] sm:$0x3]
          %v327 = vmul.f32 %v326, 0.00390625
          %v328 = vld [vmem:[%s1] sm:$0xff]
          %v329 = vld [vmem:[%s1 + $0x8] sm:$0xff]
          %v330 = vld [vmem:[%s1 + $0x10] sm:$0xff]
          %v331 = vld [vmem:[%s1 + $0x18] sm:$0xff]
          %v332 = vld [vmem:[%s2] sm:$0x1]
          %v334 = vperm.slane %v332, 0
          %vm336 = vcmask 261120
          %v338 = vsel %vm336, %v327, 0
          %340 = vmatpush.msra.mxu0 0.0
          %341 = vmatpush.msra.mxu0 0.0
          %342 = vmatpush.msra.mxu0 0.0
          %343 = vmatpush.msra.mxu0 0.0
          %344 = vmatpush.msra.mxu0 0.0
          %345 = vmatpush.msra.mxu0 0.0
          %346 = vmatpush.msra.mxu0 0.0
          %347 = vmatpush.msra.mxu0 0.0
          %348 = vmatpush.msra.mxu0 0.0
          %349 = vmatpush.msra.mxu0 0.0
          %350 = vmatpush.msra.mxu0 0.0
          %351 = vmatpush.msra.mxu0 0.0
          %352 = vmatpush.msra.mxu0 %v331
          %353 = vmatpush.msra.mxu0 %v330
          %354 = vmatpush.msra.mxu0 %v329
          %355 = vmatpush.msra.mxu0 %v328
          %356 = vmatmul.f32.gmra.mxu0 %v338
          %v357 = vpop.f32.mrf.mxu0
          %v358 = vadd.f32 %v334, %v357
          %359 = vdwg.mxu0
          %v360 = vmax.f32 %v358, 0.0
          %v361 = vld [vmem:[%s3] sm:$0x3]
          %v362 = vld [vmem:[%s4] sm:$0x1]
          %v364 = vperm.slane %v362, 0
          %vm366 = vcmask 15360
          %v368 = vsel %vm366, %v360, 0
          %vm370 = vcmask 1041408
          %v372 = vsel %vm370, %v361, 0
          %374 = vmatpush.msra.mxu0 0.0
          %375 = vmatpush.msra.mxu0 0.0
          %376 = vmatpush.msra.mxu0 0.0
          %377 = vmatpush.msra.mxu0 0.0
          %378 = vmatpush.msra.mxu0 0.0
          %379 = vmatpush.msra.mxu0 0.0
          %380 = vmatpush.msra.mxu0 0.0
          %381 = vmatpush.msra.mxu0 0.0
          %382 = vmatpush.msra.mxu0 0.0
          %383 = vmatpush.msra.mxu0 0.0
          %384 = vmatpush.msra.mxu0 0.0
          %385 = vmatpush.msra.mxu0 0.0
          %386 = vmatpush.msra.mxu0 0.0
          %387 = vmatpush.msra.mxu0 0.0
          %388 = vmatpush.msra.mxu0 0.0
          %389 = vmatpush.msra.mxu0 %v372
          %390 = vmatmul.f32.gmra.mxu0 %v368
          %v391 = vpop.f32.mrf.mxu0
          %v392 = vadd.f32 %v364, %v391
          %393 = vdwg.mxu0
          %v394 = vxor.u32 %v392, 2147483648
          %v395 = vmul.f32 %v394, 1.442695
          %v396 = vpow.pop %v395
          %v397 = vadd.f32 %v396, 1.0
          %v398 = vrcp.pop %v397
          %v399 = vmul.f32 %v397, %v398
          %v400 = vsub.f32 1.0, %v399
          %v401 = vmul.f32 %v398, %v400
          %v402 = vadd.f32 %v398, %v401
          %vm403 = vweird.f32 %v397
          %vm404 = vweird.f32 %v398
          %vm405 = vmor %vm403, %vm404
          %v406 = vsel %vm405, %v398, %v402
          %v407 = vand.u32 2147483647, %v397
          %vm408 = vcmp.eq.f32.partialorder %v407, 8.507059e+37
          %v409 = vand.u32 %v397, 2147483648
          %v410 = vor.u32 1.1754944e-38, %v409
          %v411 = vsel %vm408, %v410, %v406
          %v412 = vmul.f32 1.0, %v411
          %413 = vst.msk [vmem:[#allocation6] sm:$0x3] %vm320, %v412
        $region52: #{tpu_custom_call.1} parent=39 // pred_fallthru
          _
        // Predicated region
        $region53: #{tpu_custom_call.1} parent=39 // pred_check
          %p414 = pneg %p162
        $region54: #{tpu_custom_call.1} parent=39 // pred_check_branch
          %416 = sbr.rel (%p414) target = $region56
        $region55: #{tpu_custom_call.1} parent=39 // pred_region
          %418 = vsyncadd [#allocation5], 0
          %s419 = smul.addr %s24, 2
          %s420 = scalar_lea.hbm %s5, %s419
          %s422 = sshll.u32 [#allocation6], 4
          %s423 = int_to_ptr.vmem [resolvable:$true] %s422
          %s424 = sshll.u32 %s420, 4
          %s425 = int_to_ptr.hbm [resolvable:$true] %s424
          %427 = dma.vmem_to_hbm [thread:$0]  %s423, 32, %s425, [#allocation5]
        $region56: #{tpu_custom_call.1} parent=39 // pred_fallthru
          _
        // Predicated region
        $region57: #{tpu_custom_call.1} parent=39 // pred_check
          %p428 = pneg %p162
        $region58: #{tpu_custom_call.1} parent=39 // pred_check_branch
          %430 = sbr.rel (%p428) target = $region60
        $region59: #{tpu_custom_call.1} parent=39 // pred_region
          %432 = dma.done [#allocation5], 32
        $region60: #{tpu_custom_call.1} parent=39 // pred_fallthru
          _
      $region40: #{tpu_custom_call.1} parent=5 // pred_fallthru
        _
      %p433 = scmp.le.s32.totalorder 2, %s15
      // Predicated region
      $region61: #{tpu_custom_call.1} parent=5 // pred_check
        %p434 = pneg %p433
      $region62: #{tpu_custom_call.1} parent=5 // pred_check_branch
        %436 = sbr.rel (%p434) target = $region64
      $region63: #{tpu_custom_call.1} parent=5 // pred_region
        %s437 = ssub.s32 %s15, 2
      $region64: #{tpu_custom_call.1} parent=5 // pred_fallthru
        _
    $region6: #{tpu_custom_call.1} parent=1 // loop_footer
      %s19 = sadd.s32 1, %s15
    $region7: #{tpu_custom_call.1} parent=1 // loop_footer_branch
      %14 = sbr.rel target = $region3
    $region8: #{tpu_custom_call.1} parent=1 // loop_exit
      _
    %438 = vsyncpa [#allocation4], 1
    %s439 = scalar_lea.sflag [#allocation4], 1
    %440 = vsyncpa %s439, 1
    %441 = vsyncpa [#allocation5], 1
    %s442 = scalar_lea.sflag [#allocation5], 1
    %443 = vsyncpa %s442, 1

</llo_original>
